<compile_context>
chip_gen: v5e
topology: v5e:2x2
jax: 0.10.0
libtpu: 0.0.40
codegen_flags: <defaults>
</compile_context>

<pallas_src>
import functools

import jax
import jax.numpy as jnp
from jax.experimental import pallas as pl
from jax.experimental.pallas import tpu as pltpu


def _mpjpe_kernel(x_ref, y_ref, o_ref, acc_ref, *, inv_norm):
    i = pl.program_id(0)

    @pl.when(i == 0)
    def _():
        acc_ref[...] = jnp.zeros_like(acc_ref)

    # Load each coordinate row (lane-dense), cast in-kernel to f32.
    dx = x_ref[0:1, :].astype(jnp.float32) - y_ref[0:1, :].astype(jnp.float32)
    dy = x_ref[1:2, :].astype(jnp.float32) - y_ref[1:2, :].astype(jnp.float32)
    dz = x_ref[2:3, :].astype(jnp.float32) - y_ref[2:3, :].astype(jnp.float32)

    # Coordinate reduction as VPU multiply-adds (no per-joint XLU reduce).
    sq = dx * dx + dy * dy + dz * dz            # (1, bn)
    per_joint = jnp.sqrt(sq)                    # (1, bn); zero-padded lanes -> 0

    # One cross-lane reduce per block; accumulate across grid steps.
    acc_ref[...] += jnp.sum(per_joint, keepdims=True)

    @pl.when(i == pl.num_programs(0) - 1)
    def _():
        # scale and 1/(J*B) folded into one compile-time multiplier.
        o_ref[...] = acc_ref[...] * inv_norm


def mpjpe_pallas(output, target, pose_in_m=True, block_n=64 * 1024):
    """Pallas MPJPE. `output`/`target`: (B, ...) with trailing dims flattening to J*3."""
    batch_size = output.shape[0]
    out3 = jnp.reshape(output, (batch_size, -1, 3))
    num_joints = out3.shape[1]
    n = batch_size * num_joints

    # Lane-dense layout: coordinates on the sublane axis, B*J on the lane axis.
    # (Layout plumbing only — dtype is preserved, cast happens in-kernel.)
    x = jnp.reshape(output, (n, 3)).T           # (3, N)
    y = jnp.reshape(target, (n, 3)).T           # (3, N)

    if n <= block_n:
        bn = n                                  # single block == full lane dim
        n_pad = n
    else:
        nb = pl.cdiv(n, block_n)
        bn = pl.cdiv(n, nb)
        bn = ((bn + 127) // 128) * 128          # lane blocks multiple of 128
        n_pad = nb * bn
        if n_pad != n:
            # Zero padding contributes sqrt(0) = 0 to the sum -> harmless.
            pad = ((0, 0), (0, n_pad - n))
            x = jnp.pad(x, pad)
            y = jnp.pad(y, pad)
    grid = (n_pad // bn,)

    scale = 1000.0 if pose_in_m else 1.0
    inv_norm = float(scale) / (float(num_joints) * float(batch_size))
    kernel = functools.partial(_mpjpe_kernel, inv_norm=inv_norm)

    loss2d = pl.pallas_call(
        kernel,
        out_shape=jax.ShapeDtypeStruct((1, 1), jnp.float32),
        grid_spec=pltpu.PrefetchScalarGridSpec(
            num_scalar_prefetch=0,
            grid=grid,
            in_specs=[
                pl.BlockSpec((3, bn), lambda i: (0, i)),
                pl.BlockSpec((3, bn), lambda i: (0, i)),
            ],
            out_specs=pl.BlockSpec((1, 1), lambda i: (0, 0)),
            scratch_shapes=[pltpu.VMEM((1, 1), jnp.float32)],
        ),
        compiler_params=pltpu.CompilerParams(
            dimension_semantics=("arbitrary",),  # reduction axis (accumulator)
        ),
    )(x, y)
    return loss2d[0, 0]


def mpjpe_ref(output, target, pose_in_m=True):
    batch_size = output.shape[0]
    out3 = jnp.reshape(output, (batch_size, -1, 3)).astype(jnp.float32)
    tgt3 = jnp.reshape(target, (batch_size, -1, 3)).astype(jnp.float32)
    num_joints = out3.shape[1]
    if pose_in_m:
        out3 = out3 * 1000.0
        tgt3 = tgt3 * 1000.0
    return jnp.sum(jnp.sqrt(jnp.sum((out3 - tgt3) ** 2, axis=2))) / num_joints / batch_size


if __name__ == "__main__":
    key = jax.random.PRNGKey(0)

    # Case 1: module-typical tiny shapes (B=2, 17 joints, 3 coords, given flat).
    B, J = 2, 17
    k1, k2, k3, k4 = jax.random.split(key, 4)
    output = jax.random.normal(k1, (B, J * 3), dtype=jnp.float32) * 0.1
    target = jax.random.normal(k2, (B, J * 3), dtype=jnp.float32) * 0.1

    loss = mpjpe_pallas(output, target, pose_in_m=True)
    loss = jax.block_until_ready(loss)
    ref = mpjpe_ref(output, target, pose_in_m=True)
    assert jnp.allclose(loss, ref, rtol=1e-4, atol=1e-3), (loss, ref)

    # Case 2: exercise the multi-block (gridded accumulator + zero-pad) path
    # with a small forced block size.
    B2, J2 = 8, 333
    output2 = jax.random.normal(k3, (B2, J2 * 3), dtype=jnp.float32) * 0.1
    target2 = jax.random.normal(k4, (B2, J2 * 3), dtype=jnp.float32) * 0.1

    loss2 = mpjpe_pallas(output2, target2, pose_in_m=True, block_n=256)
    loss2 = jax.block_until_ready(loss2)
    ref2 = mpjpe_ref(output2, target2, pose_in_m=True)
    assert jnp.allclose(loss2, ref2, rtol=1e-4, atol=1e-3), (loss2, ref2)

    print("KERNEL_OK")
</pallas_src>

<mosaic_0001>
module attributes {stable_mosaic.version = 11 : i64} {
  func.func @_mpjpe_kernel(%arg0: i32, %arg1: memref<3x34xf32, #tpu.memory_space<vmem>>, %arg2: memref<3x34xf32, #tpu.memory_space<vmem>>, %arg3: memref<1x1xf32, #tpu.memory_space<vmem>>, %arg4: memref<1x1xf32, #tpu.memory_space<vmem>>) attributes {dimension_semantics = [#tpu.dimension_semantics<arbitrary>], iteration_bounds = array<i64: 1>, scalar_prefetch = 0 : i64, scratch_operands = 1 : i64, tpu.core_type = #tpu.core_type<tc>, window_params = [{transform_indices = @transform_0, window_bounds = array<i64: 3, 34>}, {transform_indices = @transform_1, window_bounds = array<i64: 3, 34>}, {pipeline_mode = #tpu.pipeline_mode<synchronous>, transform_indices = @transform_2, window_bounds = array<i64: 1, 1>}]} {
    %c0_i32 = arith.constant 0 : i32
    %0 = arith.cmpi eq, %arg0, %c0_i32 : i32
    %1 = arith.extui %0 : i1 to i32
    %c0_i32_0 = arith.constant 0 : i32
    %2 = arith.cmpi ne, %1, %c0_i32_0 : i32
    scf.if %2 {
      %cst_16 = arith.constant 0.000000e+00 : f32
      %29 = vector.broadcast %cst_16 : f32 to vector<1x1xf32>
      %c0_17 = arith.constant 0 : index
      %c0_18 = arith.constant 0 : index
      %30 = vector.load %arg4[%c0_17, %c0_18] : memref<1x1xf32, #tpu.memory_space<vmem>>, vector<1x1xf32>
      tpu.vector_store %arg4[%c0_17, %c0_18], %29 {strides = array<i32>} : memref<1x1xf32, #tpu.memory_space<vmem>>, vector<1x1xf32>,
    } else {
    }
    %c0 = arith.constant 0 : index
    %c0_1 = arith.constant 0 : index
    %3 = vector.load %arg1[%c0, %c0_1] : memref<3x34xf32, #tpu.memory_space<vmem>>, vector<1x34xf32>
    %c0_2 = arith.constant 0 : index
    %c0_3 = arith.constant 0 : index
    %4 = vector.load %arg2[%c0_2, %c0_3] : memref<3x34xf32, #tpu.memory_space<vmem>>, vector<1x34xf32>
    %5 = arith.subf %3, %4 : vector<1x34xf32>
    %c1 = arith.constant 1 : index
    %c0_4 = arith.constant 0 : index
    %6 = vector.load %arg1[%c1, %c0_4] : memref<3x34xf32, #tpu.memory_space<vmem>>, vector<1x34xf32>
    %c1_5 = arith.constant 1 : index
    %c0_6 = arith.constant 0 : index
    %7 = vector.load %arg2[%c1_5, %c0_6] : memref<3x34xf32, #tpu.memory_space<vmem>>, vector<1x34xf32>
    %8 = arith.subf %6, %7 : vector<1x34xf32>
    %c2 = arith.constant 2 : index
    %c0_7 = arith.constant 0 : index
    %9 = vector.load %arg1[%c2, %c0_7] : memref<3x34xf32, #tpu.memory_space<vmem>>, vector<1x34xf32>
    %c2_8 = arith.constant 2 : index
    %c0_9 = arith.constant 0 : index
    %10 = vector.load %arg2[%c2_8, %c0_9] : memref<3x34xf32, #tpu.memory_space<vmem>>, vector<1x34xf32>
    %11 = arith.subf %9, %10 : vector<1x34xf32>
    %12 = arith.mulf %5, %5 : vector<1x34xf32>
    %13 = arith.mulf %8, %8 : vector<1x34xf32>
    %14 = arith.addf %12, %13 : vector<1x34xf32>
    %15 = arith.mulf %11, %11 : vector<1x34xf32>
    %16 = arith.addf %14, %15 : vector<1x34xf32>
    %17 = math.sqrt %16 : vector<1x34xf32>
    %c0_10 = arith.constant 0 : index
    %c0_11 = arith.constant 0 : index
    %18 = vector.load %arg4[%c0_10, %c0_11] : memref<1x1xf32, #tpu.memory_space<vmem>>, vector<1x1xf32>
    %19 = vector.shape_cast %17 : vector<1x34xf32> to vector<1x1x34xf32>
    %cst = arith.constant dense<0.000000e+00> : vector<1xf32>
    %20 = vector.multi_reduction <add>, %19, %cst [1, 2] : vector<1x1x34xf32> to vector<1xf32>
    %21 = vector.shape_cast %20 : vector<1xf32> to vector<1x1x1xf32>
    %22 = vector.extract %21[0, 0, 0] : f32 from vector<1x1x1xf32>
    %23 = vector.broadcast %22 : f32 to vector<1x1xf32>
    %24 = arith.addf %18, %23 : vector<1x1xf32>
    %c0_12 = arith.constant 0 : index
    %c0_13 = arith.constant 0 : index
    %25 = vector.load %arg4[%c0_12, %c0_13] : memref<1x1xf32, #tpu.memory_space<vmem>>, vector<1x1xf32>
    tpu.vector_store %arg4[%c0_12, %c0_13], %24 {strides = array<i32>} : memref<1x1xf32, #tpu.memory_space<vmem>>, vector<1x1xf32>,
    %c0_i32_14 = arith.constant 0 : i32
    %26 = arith.cmpi eq, %arg0, %c0_i32_14 : i32
    %27 = arith.extui %26 : i1 to i32
    %c0_i32_15 = arith.constant 0 : i32
    %28 = arith.cmpi ne, %27, %c0_i32_15 : i32
    scf.if %28 {
      %c0_16 = arith.constant 0 : index
      %c0_17 = arith.constant 0 : index
      %29 = vector.load %arg4[%c0_16, %c0_17] : memref<1x1xf32, #tpu.memory_space<vmem>>, vector<1x1xf32>
      %cst_18 = arith.constant 29.4117641 : f32
      %30 = vector.broadcast %cst_18 : f32 to vector<1x1xf32>
      %31 = arith.mulf %29, %30 : vector<1x1xf32>
      %c0_19 = arith.constant 0 : index
      %c0_20 = arith.constant 0 : index
      %32 = vector.load %arg3[%c0_19, %c0_20] : memref<1x1xf32, #tpu.memory_space<vmem>>, vector<1x1xf32>
      tpu.vector_store %arg3[%c0_19, %c0_20], %31 {strides = array<i32>} : memref<1x1xf32, #tpu.memory_space<vmem>>, vector<1x1xf32>,
    } else {
    }
    return
  }
  func.func @transform_0(%arg0: i32) -> (i32, i32) {
    %c0_i32 = arith.constant 0 : i32
    %c0_i32_0 = arith.constant 0 : i32
    return %c0_i32, %arg0 : i32, i32
  }
  func.func @transform_1(%arg0: i32) -> (i32, i32) {
    %c0_i32 = arith.constant 0 : i32
    %c0_i32_0 = arith.constant 0 : i32
    return %c0_i32, %arg0 : i32, i32
  }
  func.func @transform_2(%arg0: i32) -> (i32, i32) {
    %c0_i32 = arith.constant 0 : i32
    %c0_i32_0 = arith.constant 0 : i32
    %c0_i32_1 = arith.constant 0 : i32
    return %c0_i32, %c0_i32_0 : i32, i32
  }
}

</mosaic_0001>

<llo_original>
// kernel: tpu_custom_call.1
$region0: #{tpu_custom_call.1}
  #allocation0 [shape = 'u32[]', space=smem, size = 0x4, offset = 0x4, fixed_abs, tag = 'smem constant byte address 0x4 - core index']
  #allocation1 [shape = 'u32[72,128]{1,0:T(1,128)}', space=vmem, size = 0x9000, scoped, tag = 'internal scratch']
  #allocation2 [shape = 'f32[1,1]{1,0:T(1,128)}', space=vmem, size = 0x200, scoped, tag = 'scratch operand']
  %s0 = inlined_call_operand.hbm [shape: f32[3,34], index: 0, kind: input, shape index: {}]
  %s1 = inlined_call_operand.hbm [shape: f32[3,34], index: 1, kind: input, shape index: {}]
  %s2 = inlined_call_operand.hbm [shape: f32[1,1], index: 2, kind: output, shape index: {}]
  %s3 = sld [smem:[#allocation0]]
  $region34: #{tpu_custom_call.1} parent=0
    _
  %s5 = ssub.s32 1, %s3
  %s6 = scalar_select 0, %s5, %s3
  $region1: #{tpu_custom_call.1} parent=0
    #allocation3 [shape = 'u8[2048]{0}', space=vmem, size = 0x800, scoped, tag = 'input window, operand 0, single buffered']
    #allocation4 [shape = 's32[1]{0}', space=sflag, size = 0x4, scoped, tag = 'scoped memory for tpu_custom_call.1']
    #allocation5 [shape = 's32[1]{0}', space=sflag, size = 0x4, scoped, tag = 'scoped memory for tpu_custom_call.1']
    #allocation6 [shape = 'u8[2048]{0}', space=vmem, size = 0x800, scoped, tag = 'input window, operand 1, single buffered']
    #allocation7 [shape = 's32[1]{0}', space=sflag, size = 0x4, scoped, tag = 'scoped memory for tpu_custom_call.1']
    #allocation8 [shape = 'u8[512]{0}', space=vmem, size = 0x400, scoped, tag = 'output window, operand 0, single buffered']
    %7 = vsyncpa [#allocation4], 0
    %8 = vsyncpa [#allocation7], 0
    %9 = vsyncpa [#allocation5], 0
    // Predicated region
    $region2: #{tpu_custom_call.1} parent=1 // pred_check
      _
    $region3: #{tpu_custom_call.1} parent=1 // pred_check_branch
      %11 = sbr.rel (0) target = $region5
    $region4: #{tpu_custom_call.1} parent=1 // pred_region
      %13 = vsyncadd [#allocation4], 0
      %s15 = sshll.u32 %s0, 4
      %s16 = int_to_ptr.hbm [resolvable:$true] %s15
      %s17 = sshll.u32 [#allocation3], 4
      %s18 = int_to_ptr.vmem [resolvable:$true] %s17
      %20 = dma.hbm_to_vmem [thread:$0]  %s16, 64, %s18, [#allocation4]
    $region5: #{tpu_custom_call.1} parent=1 // pred_fallthru
      _
    // Predicated region
    $region6: #{tpu_custom_call.1} parent=1 // pred_check
      _
    $region7: #{tpu_custom_call.1} parent=1 // pred_check_branch
      %22 = sbr.rel (0) target = $region9
    $region8: #{tpu_custom_call.1} parent=1 // pred_region
      %24 = vsyncadd [#allocation7], 0
      %s26 = sshll.u32 %s1, 4
      %s27 = int_to_ptr.hbm [resolvable:$true] %s26
      %s28 = sshll.u32 [#allocation6], 4
      %s29 = int_to_ptr.vmem [resolvable:$true] %s28
      %31 = dma.hbm_to_vmem [thread:$0]  %s27, 64, %s29, [#allocation7]
    $region9: #{tpu_custom_call.1} parent=1 // pred_fallthru
      _
    // Predicated region
    $region10: #{tpu_custom_call.1} parent=1 // pred_check
      _
    $region11: #{tpu_custom_call.1} parent=1 // pred_check_branch
      %33 = sbr.rel (0) target = $region13
    $region12: #{tpu_custom_call.1} parent=1 // pred_region
      %35 = dma.done [#allocation4], 64
    $region13: #{tpu_custom_call.1} parent=1 // pred_fallthru
      _
    // Predicated region
    $region14: #{tpu_custom_call.1} parent=1 // pred_check
      _
    $region15: #{tpu_custom_call.1} parent=1 // pred_check_branch
      %37 = sbr.rel (0) target = $region17
    $region16: #{tpu_custom_call.1} parent=1 // pred_region
      %39 = dma.done [#allocation7], 64
    $region17: #{tpu_custom_call.1} parent=1 // pred_fallthru
      _
    %p40 = scmp.eq.s32.totalorder 0, 0
    // Predicated region
    $region18: #{tpu_custom_call.1} parent=1 // pred_check
      %p41 = pneg %p40
    $region19: #{tpu_custom_call.1} parent=1 // pred_check_branch
      %43 = sbr.rel (%p41) target = $region21
    $region20: #{tpu_custom_call.1} parent=1 // pred_region
      %vm44 = vcmask 0
      %45 = vst.msk [vmem:[#allocation2] sm:$0x1] %vm44, 0.0
    $region21: #{tpu_custom_call.1} parent=1 // pred_fallthru
      _
    %v46 = vld [vmem:[#allocation3] sm:$0x1]
    %v47 = vld [vmem:[#allocation6] sm:$0x1]
    %v48 = vsub.f32 %v46, %v47
    %v49 = vld [vmem:[#allocation3 + $0x1] sm:$0x1]
    %v50 = vld [vmem:[#allocation6 + $0x1] sm:$0x1]
    %v51 = vsub.f32 %v49, %v50
    %v52 = vld [vmem:[#allocation3 + $0x2] sm:$0x1]
    %v53 = vld [vmem:[#allocation6 + $0x2] sm:$0x1]
    %v54 = vsub.f32 %v52, %v53
    %v55 = vmul.f32 %v48, %v48
    %v56 = vmul.f32 %v51, %v51
    %v57 = vadd.f32 %v55, %v56
    %v58 = vmul.f32 %v54, %v54
    %v59 = vadd.f32 %v57, %v58
    %v60 = vrsqrt.pop %v59
    %v61 = vmul.f32 %v60, %v59
    %v62 = vmul.f32 %v61, %v60
    %v63 = vmul.f32 0.5, %v62
    %v64 = vsub.f32 1.5, %v63
    %v65 = vmul.f32 %v60, %v64
    %v66 = vmul.f32 %v59, %v65
    %vm67 = vcmp.eq.f32.partialorder %v59, inf
    %v68 = vsel %vm67, %v59, %v66
    %vm69 = vcmp.eq.f32.partialorder %v59, 0.0
    %v70 = vand.u32 %v59, 2147483648
    %v71 = vsel %vm69, %v70, %v68
    %v72 = vld [vmem:[#allocation2] sm:$0x1]
    %vm73 = vcmask 270336
    %v74 = vsel %vm73, %v71, 0.0
    %75 = vadd.xlane.f32.xlu0 %v74
    %v76 = vpop.xlane.xlu0 %75
    %v77 = vrot.slane %v76, 4
    %v78 = vadd.f32 %v76, %v77
    %v79 = vrot.slane %v78, 2
    %v80 = vadd.f32 %v78, %v79
    %v81 = vrot.slane %v80, 1
    %v82 = vadd.f32 %v80, %v81
    %s83 = vtos %v82
    %v84 = vstv %s83
    %v85 = vadd.f32 %v72, %v84
    %vm86 = vcmask 0
    %87 = vst.msk [vmem:[#allocation2] sm:$0x1] %vm86, %v85
    // Predicated region
    $region22: #{tpu_custom_call.1} parent=1 // pred_check
      %p88 = pneg %p40
    $region23: #{tpu_custom_call.1} parent=1 // pred_check_branch
      %90 = sbr.rel (%p88) target = $region25
    $region24: #{tpu_custom_call.1} parent=1 // pred_region
      %v91 = vld [vmem:[#allocation2] sm:$0x1]
      %v92 = vmul.f32 %v91, 29.411764
      %93 = vst.msk [vmem:[#allocation8] sm:$0x1] %vm86, %v92
    $region25: #{tpu_custom_call.1} parent=1 // pred_fallthru
      _
    // Predicated region
    $region26: #{tpu_custom_call.1} parent=1 // pred_check
      _
    $region27: #{tpu_custom_call.1} parent=1 // pred_check_branch
      %95 = sbr.rel (0) target = $region29
    $region28: #{tpu_custom_call.1} parent=1 // pred_region
      %97 = vsyncadd [#allocation5], 0
      %s99 = sshll.u32 [#allocation8], 4
      %s100 = int_to_ptr.vmem [resolvable:$true] %s99
      %s101 = sshll.u32 %s2, 4
      %s102 = int_to_ptr.hbm [resolvable:$true] %s101
      %104 = dma.vmem_to_hbm [thread:$0]  %s100, 16, %s102, [#allocation5]
    $region29: #{tpu_custom_call.1} parent=1 // pred_fallthru
      _
    // Predicated region
    $region30: #{tpu_custom_call.1} parent=1 // pred_check
      _
    $region31: #{tpu_custom_call.1} parent=1 // pred_check_branch
      %106 = sbr.rel (0) target = $region33
    $region32: #{tpu_custom_call.1} parent=1 // pred_region
      %108 = dma.done [#allocation5], 16
    $region33: #{tpu_custom_call.1} parent=1 // pred_fallthru
      _
    %109 = vsyncpa [#allocation4], 1
    %110 = vsyncpa [#allocation7], 1
    %111 = vsyncpa [#allocation5], 1

</llo_original>
